<compile_context>
chip_gen: v6e
topology: v6e:2x2x1
jax: 0.10.0
libtpu: 0.0.40
codegen_flags: <defaults>
</compile_context>

<pallas_src>
import jax
import jax.numpy as jnp
from jax.experimental import pallas as pl
from jax.experimental.pallas import tpu as pltpu


def _tv_kernel(ia_ref, if_ref, tv1_ref, tv2_ref):
    # ia_ref / if_ref: (B, H, W) block in VMEM, native dtype; cast after load.
    r = ia_ref[...].astype(jnp.float32) - if_ref[...].astype(jnp.float32)

    dh = r[:, 1:, :] - r[:, :-1, :]   # vertical differences   (B, H-1, W)
    dw = r[:, :, 1:] - r[:, :, :-1]   # horizontal differences (B, H, W-1)

    s1 = jnp.sum(dh * dh)
    s2 = jnp.sum(dw * dw)

    # Per-grid-step partial sums, broadcast across a lane-dense (1, 8, 128)
    # tile.  Every grid step owns a distinct output block, so this is safe
    # under "parallel" (megacore) semantics; the wrapper reduces the partials.
    tv1_ref[...] = jnp.broadcast_to(s1, tv1_ref.shape)
    tv2_ref[...] = jnp.broadcast_to(s2, tv2_ref.shape)


def _plan_blocks(nc, h, w, itemsize):
    """Pick images-per-block B and a VMEM limit from the device VMEM size."""
    try:
        vmem_cap = int(pltpu.get_tpu_info().vmem_capacity_bytes)
    except Exception:
        vmem_cap = 64 * 1024 * 1024  # conservative fallback: v7x per-core VMEM
    # Auto-pipeline working set: 2 inputs x 2 (double) buffers x block_bytes.
    pipeline_budget = max(8 << 20, int(vmem_cap * 0.4))
    per_block_budget = pipeline_budget // 4
    per_image = h * w * itemsize
    b = int(max(1, min(nc, per_block_budget // per_image)))
    block_bytes = b * per_image
    vmem_limit = min(vmem_cap * 3 // 4, 4 * block_bytes + (16 << 20))
    vmem_limit = int(max(vmem_limit, 32 << 20))
    return b, vmem_limit


def tv_loss(IA, IF):
    """Pallas implementation of TV_Loss.forward(IA, IF).

    IA, IF: (N, C, H, W) arrays. Returns a scalar float32.
    """
    assert IA.shape == IF.shape and IA.ndim == 4
    N, C, H, W = IA.shape
    assert H >= 2 and W >= 2, "TV loss needs at least 2 rows and 2 columns"
    NC = N * C
    itemsize = jnp.dtype(IA.dtype).itemsize

    B, vmem_limit = _plan_blocks(NC, H, W, itemsize)
    G = -(-NC // B)            # number of grid steps
    pad = G * B - NC

    ia = IA.reshape(NC, H, W)
    if_ = IF.reshape(NC, H, W)
    if pad:
        # Zero padding contributes exactly 0 to both squared-difference sums.
        ia = jnp.pad(ia, ((0, pad), (0, 0), (0, 0)))
        if_ = jnp.pad(if_, ((0, pad), (0, 0), (0, 0)))

    # TODO(synk): a single image larger than the per-block VMEM budget would
    # need H-tiling with a one-row halo; not required for these shapes.
    tv1_p, tv2_p = pl.pallas_call(
        _tv_kernel,
        out_shape=(
            jax.ShapeDtypeStruct((G, 8, 128), jnp.float32),
            jax.ShapeDtypeStruct((G, 8, 128), jnp.float32),
        ),
        grid_spec=pltpu.PrefetchScalarGridSpec(
            num_scalar_prefetch=0,
            grid=(G,),
            in_specs=[
                pl.BlockSpec((B, H, W), lambda i: (i, 0, 0)),
                pl.BlockSpec((B, H, W), lambda i: (i, 0, 0)),
            ],
            out_specs=[
                pl.BlockSpec((1, 8, 128), lambda i: (i, 0, 0)),
                pl.BlockSpec((1, 8, 128), lambda i: (i, 0, 0)),
            ],
        ),
        compiler_params=pltpu.CompilerParams(
            # Each grid step writes its own output block -> safe to shard the
            # image loop across TensorCores (v7x megacore).
            dimension_semantics=("parallel",),
            vmem_limit_bytes=vmem_limit,
        ),
        cost_estimate=pl.CostEstimate(
            flops=6 * NC * H * W,
            transcendentals=0,
            bytes_accessed=2 * NC * H * W * itemsize + 2 * G * 8 * 128 * 4,
        ),
    )(ia, if_)

    # mean() denominators: tv1 over (N, C, H-1, W), tv2 over (N, C, H, W-1)
    tv1 = jnp.sum(tv1_p[:, 0, 0]) / jnp.float32(NC * (H - 1) * W)
    tv2 = jnp.sum(tv2_p[:, 0, 0]) / jnp.float32(NC * H * (W - 1))
    return tv1 + tv2


def tv_loss_ref(IA, IF):
    """Pure-JAX reference matching the PyTorch module exactly."""
    r = IA - IF
    h, w = r.shape[2], r.shape[3]
    tv1 = jnp.mean(jnp.square(r[:, :, 1:, :] - r[:, :, : h - 1, :]))
    tv2 = jnp.mean(jnp.square(r[:, :, :, 1:] - r[:, :, :, : w - 1]))
    return tv1 + tv2


if __name__ == "__main__":
    key = jax.random.PRNGKey(0)
    k1, k2 = jax.random.split(key)
    N, C, H, W = 2, 4, 16, 16
    IA = jax.random.normal(k1, (N, C, H, W), dtype=jnp.float32)
    IF = jax.random.normal(k2, (N, C, H, W), dtype=jnp.float32)

    out = jax.block_until_ready(tv_loss(IA, IF))
    ref = jax.block_until_ready(tv_loss_ref(IA, IF))

    assert jnp.allclose(out, ref, rtol=1e-5, atol=1e-6), (out, ref)
    print("KERNEL_OK")
</pallas_src>

<mosaic_0001>
module attributes {stable_mosaic.version = 11 : i64} {
  func.func @_tv_kernel(%arg0: i32, %arg1: memref<8x16x16xf32, #tpu.memory_space<vmem>>, %arg2: memref<8x16x16xf32, #tpu.memory_space<vmem>>, %arg3: memref<1x8x128xf32, #tpu.memory_space<vmem>>, %arg4: memref<1x8x128xf32, #tpu.memory_space<vmem>>) attributes {dimension_semantics = [#tpu.dimension_semantics<parallel>], iteration_bounds = array<i64: 1>, scalar_prefetch = 0 : i64, scratch_operands = 0 : i64, tpu.core_type = #tpu.core_type<tc>, window_params = [{transform_indices = @transform_0, window_bounds = array<i64: 8, 16, 16>}, {transform_indices = @transform_1, window_bounds = array<i64: 8, 16, 16>}, {transform_indices = @transform_2, window_bounds = array<i64: 1, 8, 128>}, {transform_indices = @transform_3, window_bounds = array<i64: 1, 8, 128>}]} {
    %c0 = arith.constant 0 : index
    %c0_0 = arith.constant 0 : index
    %c0_1 = arith.constant 0 : index
    %0 = vector.load %arg1[%c0, %c0_0, %c0_1] : memref<8x16x16xf32, #tpu.memory_space<vmem>>, vector<8x16x16xf32>
    %c0_2 = arith.constant 0 : index
    %c0_3 = arith.constant 0 : index
    %c0_4 = arith.constant 0 : index
    %1 = vector.load %arg2[%c0_2, %c0_3, %c0_4] : memref<8x16x16xf32, #tpu.memory_space<vmem>>, vector<8x16x16xf32>
    %2 = arith.subf %0, %1 : vector<8x16x16xf32>
    %3 = vector.extract_strided_slice %2 {offsets = [0, 1, 0], sizes = [8, 15, 16], strides = [1, 1, 1]} : vector<8x16x16xf32> to vector<8x15x16xf32>
    %4 = vector.extract_strided_slice %2 {offsets = [0, 0, 0], sizes = [8, 15, 16], strides = [1, 1, 1]} : vector<8x16x16xf32> to vector<8x15x16xf32>
    %5 = arith.subf %3, %4 : vector<8x15x16xf32>
    %6 = vector.extract_strided_slice %2 {offsets = [0, 0, 1], sizes = [8, 16, 15], strides = [1, 1, 1]} : vector<8x16x16xf32> to vector<8x16x15xf32>
    %7 = vector.extract_strided_slice %2 {offsets = [0, 0, 0], sizes = [8, 16, 15], strides = [1, 1, 1]} : vector<8x16x16xf32> to vector<8x16x15xf32>
    %8 = arith.subf %6, %7 : vector<8x16x15xf32>
    %9 = arith.mulf %5, %5 : vector<8x15x16xf32>
    %10 = vector.shape_cast %9 : vector<8x15x16xf32> to vector<1x8x15x16xf32>
    %cst = arith.constant dense<0.000000e+00> : vector<1xf32>
    %11 = vector.multi_reduction <add>, %10, %cst [1, 2, 3] : vector<1x8x15x16xf32> to vector<1xf32>
    %12 = vector.shape_cast %11 : vector<1xf32> to vector<1x1x1x1xf32>
    %13 = vector.extract %12[0, 0, 0, 0] : f32 from vector<1x1x1x1xf32>
    %14 = arith.mulf %8, %8 : vector<8x16x15xf32>
    %15 = vector.shape_cast %14 : vector<8x16x15xf32> to vector<1x8x16x15xf32>
    %cst_5 = arith.constant dense<0.000000e+00> : vector<1xf32>
    %16 = vector.multi_reduction <add>, %15, %cst_5 [1, 2, 3] : vector<1x8x16x15xf32> to vector<1xf32>
    %17 = vector.shape_cast %16 : vector<1xf32> to vector<1x1x1x1xf32>
    %18 = vector.extract %17[0, 0, 0, 0] : f32 from vector<1x1x1x1xf32>
    %19 = vector.broadcast %13 : f32 to vector<1x8x128xf32>
    %c0_6 = arith.constant 0 : index
    %c0_7 = arith.constant 0 : index
    %c0_8 = arith.constant 0 : index
    %20 = vector.load %arg3[%c0_6, %c0_7, %c0_8] : memref<1x8x128xf32, #tpu.memory_space<vmem>>, vector<1x8x128xf32>
    tpu.vector_store %arg3[%c0_6, %c0_7, %c0_8], %19 {strides = array<i32>} : memref<1x8x128xf32, #tpu.memory_space<vmem>>, vector<1x8x128xf32>,
    %21 = vector.broadcast %18 : f32 to vector<1x8x128xf32>
    %c0_9 = arith.constant 0 : index
    %c0_10 = arith.constant 0 : index
    %c0_11 = arith.constant 0 : index
    %22 = vector.load %arg4[%c0_9, %c0_10, %c0_11] : memref<1x8x128xf32, #tpu.memory_space<vmem>>, vector<1x8x128xf32>
    tpu.vector_store %arg4[%c0_9, %c0_10, %c0_11], %21 {strides = array<i32>} : memref<1x8x128xf32, #tpu.memory_space<vmem>>, vector<1x8x128xf32>,
    return
  }
  func.func @transform_0(%arg0: i32) -> (i32, i32, i32) {
    %c0_i32 = arith.constant 0 : i32
    %c0_i32_0 = arith.constant 0 : i32
    %c0_i32_1 = arith.constant 0 : i32
    return %arg0, %c0_i32, %c0_i32_0 : i32, i32, i32
  }
  func.func @transform_1(%arg0: i32) -> (i32, i32, i32) {
    %c0_i32 = arith.constant 0 : i32
    %c0_i32_0 = arith.constant 0 : i32
    %c0_i32_1 = arith.constant 0 : i32
    return %arg0, %c0_i32, %c0_i32_0 : i32, i32, i32
  }
  func.func @transform_2(%arg0: i32) -> (i32, i32, i32) {
    %c0_i32 = arith.constant 0 : i32
    %c0_i32_0 = arith.constant 0 : i32
    %c0_i32_1 = arith.constant 0 : i32
    return %arg0, %c0_i32, %c0_i32_0 : i32, i32, i32
  }
  func.func @transform_3(%arg0: i32) -> (i32, i32, i32) {
    %c0_i32 = arith.constant 0 : i32
    %c0_i32_0 = arith.constant 0 : i32
    %c0_i32_1 = arith.constant 0 : i32
    return %arg0, %c0_i32, %c0_i32_0 : i32, i32, i32
  }
}

</mosaic_0001>

<llo_original>
// kernel: tpu_custom_call.1
$region0: #{tpu_custom_call.1}
  #allocation0 [shape = 'u32[]', space=smem, size = 0x4, offset = 0x4, fixed_abs, tag = 'smem constant byte address 0x4 - core index']
  #allocation1 [shape = 'u32[144,128]{1,0:T(1,128)}', space=vmem, size = 0x12000, scoped, tag = 'internal scratch']
  %s0 = inlined_call_operand.hbm [shape: f32[8,16,16], index: 0, kind: input, shape index: {}]
  %s1 = inlined_call_operand.hbm [shape: f32[8,16,16], index: 1, kind: input, shape index: {}]
  %s2 = inlined_call_operand.hbm [shape: f32[1,8,128], index: 2, kind: output, shape index: {0}]
  %s3 = inlined_call_operand.hbm [shape: f32[1,8,128], index: 3, kind: output, shape index: {1}]
  %4 = xla_tuple %s2, %s3
  %s5 = sld [smem:[#allocation0]]
  $region34: #{tpu_custom_call.1} parent=0
    _
  %s7 = ssub.s32 1, %s5
  %s8 = scalar_select 0, %s7, %s5
  $region1: #{tpu_custom_call.1} parent=0
    #allocation2 [shape = 'u8[65536]{0}', space=vmem, size = 0x10000, scoped, tag = 'input window, operand 0, single buffered']
    #allocation3 [shape = 's32[1]{0}', space=sflag, size = 0x4, scoped, tag = 'scoped memory for tpu_custom_call.1']
    #allocation4 [shape = 's32[1]{0}', space=sflag, size = 0x4, scoped, tag = 'scoped memory for tpu_custom_call.1']
    #allocation5 [shape = 'u8[65536]{0}', space=vmem, size = 0x10000, scoped, tag = 'input window, operand 1, single buffered']
    #allocation6 [shape = 's32[1]{0}', space=sflag, size = 0x4, scoped, tag = 'scoped memory for tpu_custom_call.1']
    #allocation7 [shape = 'u8[4096]{0}', space=vmem, size = 0x1000, scoped, tag = 'output window, operand 0, single buffered']
    #allocation8 [shape = 'u8[4096]{0}', space=vmem, size = 0x1000, scoped, tag = 'output window, operand 1, single buffered']
    #allocation9 [shape = 's32[1]{0}', space=sflag, size = 0x4, scoped, tag = 'scoped memory for tpu_custom_call.1']
    %9 = vsyncpa [#allocation3], 0
    %10 = vsyncpa [#allocation6], 0
    %11 = vsyncpa [#allocation4], 0
    %12 = vsyncpa [#allocation9], 0
    // Predicated region
    $region2: #{tpu_custom_call.1} parent=1 // pred_check
      _
    $region3: #{tpu_custom_call.1} parent=1 // pred_check_branch
      %14 = sbr.rel (0) target = $region5
    $region4: #{tpu_custom_call.1} parent=1 // pred_region
      %s16 = ssub.s32 2048, 2048
      %17 = vsyncadd [#allocation3], %s16
      %s18 = sshll.u32 [#allocation2], 4
      %s19 = int_to_ptr.vmem [resolvable:$true] %s18
      %24 = dma.hbm_to_vmem [thread:$0]  %s0, 2048, %s19, [#allocation3], 128, 128, 8
    $region5: #{tpu_custom_call.1} parent=1 // pred_fallthru
      _
    // Predicated region
    $region6: #{tpu_custom_call.1} parent=1 // pred_check
      _
    $region7: #{tpu_custom_call.1} parent=1 // pred_check_branch
      %26 = sbr.rel (0) target = $region9
    $region8: #{tpu_custom_call.1} parent=1 // pred_region
      %s28 = ssub.s32 2048, 2048
      %29 = vsyncadd [#allocation6], %s28
      %s30 = sshll.u32 [#allocation5], 4
      %s31 = int_to_ptr.vmem [resolvable:$true] %s30
      %36 = dma.hbm_to_vmem [thread:$0]  %s1, 2048, %s31, [#allocation6], 128, 128, 8
    $region9: #{tpu_custom_call.1} parent=1 // pred_fallthru
      _
    // Predicated region
    $region10: #{tpu_custom_call.1} parent=1 // pred_check
      _
    $region11: #{tpu_custom_call.1} parent=1 // pred_check_branch
      %38 = sbr.rel (0) target = $region13
    $region12: #{tpu_custom_call.1} parent=1 // pred_region
      %39 = dma.done [#allocation3], 2048
    $region13: #{tpu_custom_call.1} parent=1 // pred_fallthru
      _
    // Predicated region
    $region14: #{tpu_custom_call.1} parent=1 // pred_check
      _
    $region15: #{tpu_custom_call.1} parent=1 // pred_check_branch
      %41 = sbr.rel (0) target = $region17
    $region16: #{tpu_custom_call.1} parent=1 // pred_region
      %42 = dma.done [#allocation6], 2048
    $region17: #{tpu_custom_call.1} parent=1 // pred_fallthru
      _
    %v43 = vld [vmem:[#allocation2] sm:$0xff]
    %v44 = vld [vmem:[#allocation2 + $0x8] sm:$0xff]
    %v45 = vld [vmem:[#allocation2 + $0x10] sm:$0xff]
    %v46 = vld [vmem:[#allocation2 + $0x18] sm:$0xff]
    %v47 = vld [vmem:[#allocation2 + $0x20] sm:$0xff]
    %v48 = vld [vmem:[#allocation2 + $0x28] sm:$0xff]
    %v49 = vld [vmem:[#allocation2 + $0x30] sm:$0xff]
    %v50 = vld [vmem:[#allocation2 + $0x38] sm:$0xff]
    %v51 = vld [vmem:[#allocation2 + $0x40] sm:$0xff]
    %v52 = vld [vmem:[#allocation2 + $0x48] sm:$0xff]
    %v53 = vld [vmem:[#allocation2 + $0x50] sm:$0xff]
    %v54 = vld [vmem:[#allocation2 + $0x58] sm:$0xff]
    %v55 = vld [vmem:[#allocation2 + $0x60] sm:$0xff]
    %v56 = vld [vmem:[#allocation2 + $0x68] sm:$0xff]
    %v57 = vld [vmem:[#allocation2 + $0x70] sm:$0xff]
    %v58 = vld [vmem:[#allocation2 + $0x78] sm:$0xff]
    %v59 = vld [vmem:[#allocation5] sm:$0xff]
    %v60 = vld [vmem:[#allocation5 + $0x8] sm:$0xff]
    %v61 = vld [vmem:[#allocation5 + $0x10] sm:$0xff]
    %v62 = vld [vmem:[#allocation5 + $0x18] sm:$0xff]
    %v63 = vld [vmem:[#allocation5 + $0x20] sm:$0xff]
    %v64 = vld [vmem:[#allocation5 + $0x28] sm:$0xff]
    %v65 = vld [vmem:[#allocation5 + $0x30] sm:$0xff]
    %v66 = vld [vmem:[#allocation5 + $0x38] sm:$0xff]
    %v67 = vld [vmem:[#allocation5 + $0x40] sm:$0xff]
    %v68 = vld [vmem:[#allocation5 + $0x48] sm:$0xff]
    %v69 = vld [vmem:[#allocation5 + $0x50] sm:$0xff]
    %v70 = vld [vmem:[#allocation5 + $0x58] sm:$0xff]
    %v71 = vld [vmem:[#allocation5 + $0x60] sm:$0xff]
    %v72 = vld [vmem:[#allocation5 + $0x68] sm:$0xff]
    %v73 = vld [vmem:[#allocation5 + $0x70] sm:$0xff]
    %v74 = vld [vmem:[#allocation5 + $0x78] sm:$0xff]
    %v75 = vsub.f32 %v43, %v59
    %v76 = vsub.f32 %v44, %v60
    %v77 = vsub.f32 %v45, %v61
    %v78 = vsub.f32 %v46, %v62
    %v79 = vsub.f32 %v47, %v63
    %v80 = vsub.f32 %v48, %v64
    %v81 = vsub.f32 %v49, %v65
    %v82 = vsub.f32 %v50, %v66
    %v83 = vsub.f32 %v51, %v67
    %v84 = vsub.f32 %v52, %v68
    %v85 = vsub.f32 %v53, %v69
    %v86 = vsub.f32 %v54, %v70
    %v87 = vsub.f32 %v55, %v71
    %v88 = vsub.f32 %v56, %v72
    %v89 = vsub.f32 %v57, %v73
    %v90 = vsub.f32 %v58, %v74
    %vm107 = vcmask 1040384
    %v108 = vrot.slane %v75, 7
    %v109 = vrot.slane %v76, 7
    %v110 = vsel %vm107, %v108, %v109
    %v111 = vrot.slane %v77, 7
    %v112 = vrot.slane %v78, 7
    %v113 = vsel %vm107, %v111, %v112
    %v114 = vrot.slane %v79, 7
    %v115 = vrot.slane %v80, 7
    %v116 = vsel %vm107, %v114, %v115
    %v117 = vrot.slane %v81, 7
    %v118 = vrot.slane %v82, 7
    %v119 = vsel %vm107, %v117, %v118
    %v120 = vrot.slane %v83, 7
    %v121 = vrot.slane %v84, 7
    %v122 = vsel %vm107, %v120, %v121
    %v123 = vrot.slane %v85, 7
    %v124 = vrot.slane %v86, 7
    %v125 = vsel %vm107, %v123, %v124
    %v126 = vrot.slane %v87, 7
    %v127 = vrot.slane %v88, 7
    %v128 = vsel %vm107, %v126, %v127
    %v129 = vrot.slane %v89, 7
    %v130 = vrot.slane %v90, 7
    %v131 = vsel %vm107, %v129, %v130
    %v148 = vsub.f32 %v75, %v108
    %v149 = vsub.f32 %v76, %v110
    %v150 = vsub.f32 %v77, %v111
    %v151 = vsub.f32 %v78, %v113
    %v152 = vsub.f32 %v79, %v114
    %v153 = vsub.f32 %v80, %v116
    %v154 = vsub.f32 %v81, %v117
    %v155 = vsub.f32 %v82, %v119
    %v156 = vsub.f32 %v83, %v120
    %v157 = vsub.f32 %v84, %v122
    %v158 = vsub.f32 %v85, %v123
    %v159 = vsub.f32 %v86, %v125
    %v160 = vsub.f32 %v87, %v126
    %v161 = vsub.f32 %v88, %v128
    %v162 = vsub.f32 %v89, %v129
    %v163 = vsub.f32 %v90, %v131
    %164 = vrot.lane.b32.xlu0 %v75, 1
    %v165 = vpop.permute.xlu0 %164
    %166 = vrot.lane.b32.xlu0 %v76, 1
    %v167 = vpop.permute.xlu0 %166
    %168 = vrot.lane.b32.xlu0 %v77, 1
    %v169 = vpop.permute.xlu0 %168
    %170 = vrot.lane.b32.xlu0 %v78, 1
    %v171 = vpop.permute.xlu0 %170
    %172 = vrot.lane.b32.xlu0 %v79, 1
    %v173 = vpop.permute.xlu0 %172
    %174 = vrot.lane.b32.xlu0 %v80, 1
    %v175 = vpop.permute.xlu0 %174
    %176 = vrot.lane.b32.xlu0 %v81, 1
    %v177 = vpop.permute.xlu0 %176
    %178 = vrot.lane.b32.xlu0 %v82, 1
    %v179 = vpop.permute.xlu0 %178
    %180 = vrot.lane.b32.xlu0 %v83, 1
    %v181 = vpop.permute.xlu0 %180
    %182 = vrot.lane.b32.xlu0 %v84, 1
    %v183 = vpop.permute.xlu0 %182
    %184 = vrot.lane.b32.xlu0 %v85, 1
    %v185 = vpop.permute.xlu0 %184
    %186 = vrot.lane.b32.xlu0 %v86, 1
    %v187 = vpop.permute.xlu0 %186
    %188 = vrot.lane.b32.xlu0 %v87, 1
    %v189 = vpop.permute.xlu0 %188
    %190 = vrot.lane.b32.xlu0 %v88, 1
    %v191 = vpop.permute.xlu0 %190
    %192 = vrot.lane.b32.xlu0 %v89, 1
    %v193 = vpop.permute.xlu0 %192
    %194 = vrot.lane.b32.xlu0 %v90, 1
    %v195 = vpop.permute.xlu0 %194
    %v212 = vsub.f32 %v75, %v165
    %v213 = vsub.f32 %v76, %v167
    %v214 = vsub.f32 %v77, %v169
    %v215 = vsub.f32 %v78, %v171
    %v216 = vsub.f32 %v79, %v173
    %v217 = vsub.f32 %v80, %v175
    %v218 = vsub.f32 %v81, %v177
    %v219 = vsub.f32 %v82, %v179
    %v220 = vsub.f32 %v83, %v181
    %v221 = vsub.f32 %v84, %v183
    %v222 = vsub.f32 %v85, %v185
    %v223 = vsub.f32 %v86, %v187
    %v224 = vsub.f32 %v87, %v189
    %v225 = vsub.f32 %v88, %v191
    %v226 = vsub.f32 %v89, %v193
    %v227 = vsub.f32 %v90, %v195
    %v228 = vmul.f32 %v148, %v148
    %v229 = vmul.f32 %v149, %v149
    %v230 = vmul.f32 %v150, %v150
    %v231 = vmul.f32 %v151, %v151
    %v232 = vmul.f32 %v152, %v152
    %v233 = vmul.f32 %v153, %v153
    %v234 = vmul.f32 %v154, %v154
    %v235 = vmul.f32 %v155, %v155
    %v236 = vmul.f32 %v156, %v156
    %v237 = vmul.f32 %v157, %v157
    %v238 = vmul.f32 %v158, %v158
    %v239 = vmul.f32 %v159, %v159
    %v240 = vmul.f32 %v160, %v160
    %v241 = vmul.f32 %v161, %v161
    %v242 = vmul.f32 %v162, %v162
    %v243 = vmul.f32 %v163, %v163
    %vm260 = vcmask 1046528
    %v261 = vrot.slane %v228, 1
    %v262 = vrot.slane %v229, 1
    %v263 = vsel %vm260, %v261, %v262
    %v264 = vrot.slane %v230, 1
    %v265 = vrot.slane %v231, 1
    %v266 = vsel %vm260, %v264, %v265
    %v267 = vrot.slane %v232, 1
    %v268 = vrot.slane %v233, 1
    %v269 = vsel %vm260, %v267, %v268
    %v270 = vrot.slane %v234, 1
    %v271 = vrot.slane %v235, 1
    %v272 = vsel %vm260, %v270, %v271
    %v273 = vrot.slane %v236, 1
    %v274 = vrot.slane %v237, 1
    %v275 = vsel %vm260, %v273, %v274
    %v276 = vrot.slane %v238, 1
    %v277 = vrot.slane %v239, 1
    %v278 = vsel %vm260, %v276, %v277
    %v279 = vrot.slane %v240, 1
    %v280 = vrot.slane %v241, 1
    %v281 = vsel %vm260, %v279, %v280
    %v282 = vrot.slane %v242, 1
    %v283 = vrot.slane %v243, 1
    %v284 = vsel %vm260, %v282, %v283
    %vm301 = vcmask 130048
    %v302 = vsel %vm301, %v263, 0.0
    %vm303 = vcmask 129024
    %v304 = vsel %vm303, %v262, 0.0
    %v305 = vadd.f32 %v302, %v304
    %v306 = vsel %vm301, %v266, 0.0
    %v307 = vadd.f32 %v305, %v306
    %v308 = vsel %vm303, %v265, 0.0
    %v309 = vadd.f32 %v307, %v308
    %v310 = vsel %vm301, %v269, 0.0
    %v311 = vadd.f32 %v309, %v310
    %v312 = vsel %vm303, %v268, 0.0
    %v313 = vadd.f32 %v311, %v312
    %v314 = vsel %vm301, %v272, 0.0
    %v315 = vadd.f32 %v313, %v314
    %v316 = vsel %vm303, %v271, 0.0
    %v317 = vadd.f32 %v315, %v316
    %v318 = vsel %vm301, %v275, 0.0
    %v319 = vadd.f32 %v317, %v318
    %v320 = vsel %vm303, %v274, 0.0
    %v321 = vadd.f32 %v319, %v320
    %v322 = vsel %vm301, %v278, 0.0
    %v323 = vadd.f32 %v321, %v322
    %v324 = vsel %vm303, %v277, 0.0
    %v325 = vadd.f32 %v323, %v324
    %v326 = vsel %vm301, %v281, 0.0
    %v327 = vadd.f32 %v325, %v326
    %v328 = vsel %vm303, %v280, 0.0
    %v329 = vadd.f32 %v327, %v328
    %v330 = vsel %vm301, %v284, 0.0
    %v331 = vadd.f32 %v329, %v330
    %v332 = vsel %vm303, %v283, 0.0
    %v333 = vadd.f32 %v331, %v332
    %334 = vadd.xlane.f32.xlu0 %v333
    %v335 = vpop.xlane.xlu0 %334
    %v336 = vrot.slane %v335, 4
    %v337 = vadd.f32 %v335, %v336
    %v338 = vrot.slane %v337, 2
    %v339 = vadd.f32 %v337, %v338
    %v340 = vrot.slane %v339, 1
    %v341 = vadd.f32 %v339, %v340
    %s342 = vtos %v341
    %v343 = vmul.f32 %v212, %v212
    %v344 = vmul.f32 %v213, %v213
    %v345 = vmul.f32 %v214, %v214
    %v346 = vmul.f32 %v215, %v215
    %v347 = vmul.f32 %v216, %v216
    %v348 = vmul.f32 %v217, %v217
    %v349 = vmul.f32 %v218, %v218
    %v350 = vmul.f32 %v219, %v219
    %v351 = vmul.f32 %v220, %v220
    %v352 = vmul.f32 %v221, %v221
    %v353 = vmul.f32 %v222, %v222
    %v354 = vmul.f32 %v223, %v223
    %v355 = vmul.f32 %v224, %v224
    %v356 = vmul.f32 %v225, %v225
    %v357 = vmul.f32 %v226, %v226
    %v358 = vmul.f32 %v227, %v227
    %375 = vrot.lane.b32.xlu0 %v343, 127
    %v376 = vpop.permute.xlu0 %375
    %377 = vrot.lane.b32.xlu0 %v344, 127
    %v378 = vpop.permute.xlu0 %377
    %379 = vrot.lane.b32.xlu0 %v345, 127
    %v380 = vpop.permute.xlu0 %379
    %381 = vrot.lane.b32.xlu0 %v346, 127
    %v382 = vpop.permute.xlu0 %381
    %383 = vrot.lane.b32.xlu0 %v347, 127
    %v384 = vpop.permute.xlu0 %383
    %385 = vrot.lane.b32.xlu0 %v348, 127
    %v386 = vpop.permute.xlu0 %385
    %387 = vrot.lane.b32.xlu0 %v349, 127
    %v388 = vpop.permute.xlu0 %387
    %389 = vrot.lane.b32.xlu0 %v350, 127
    %v390 = vpop.permute.xlu0 %389
    %391 = vrot.lane.b32.xlu0 %v351, 127
    %v392 = vpop.permute.xlu0 %391
    %393 = vrot.lane.b32.xlu0 %v352, 127
    %v394 = vpop.permute.xlu0 %393
    %395 = vrot.lane.b32.xlu0 %v353, 127
    %v396 = vpop.permute.xlu0 %395
    %397 = vrot.lane.b32.xlu0 %v354, 127
    %v398 = vpop.permute.xlu0 %397
    %399 = vrot.lane.b32.xlu0 %v355, 127
    %v400 = vpop.permute.xlu0 %399
    %401 = vrot.lane.b32.xlu0 %v356, 127
    %v402 = vpop.permute.xlu0 %401
    %403 = vrot.lane.b32.xlu0 %v357, 127
    %v404 = vpop.permute.xlu0 %403
    %405 = vrot.lane.b32.xlu0 %v358, 127
    %v406 = vpop.permute.xlu0 %405
    %vm423 = vcmask 121856
    %v424 = vsel %vm423, %v376, 0.0
    %v425 = vsel %vm423, %v378, 0.0
    %v426 = vadd.f32 %v424, %v425
    %v427 = vsel %vm423, %v380, 0.0
    %v428 = vadd.f32 %v426, %v427
    %v429 = vsel %vm423, %v382, 0.0
    %v430 = vadd.f32 %v428, %v429
    %v431 = vsel %vm423, %v384, 0.0
    %v432 = vadd.f32 %v430, %v431
    %v433 = vsel %vm423, %v386, 0.0
    %v434 = vadd.f32 %v432, %v433
    %v435 = vsel %vm423, %v388, 0.0
    %v436 = vadd.f32 %v434, %v435
    %v437 = vsel %vm423, %v390, 0.0
    %v438 = vadd.f32 %v436, %v437
    %v439 = vsel %vm423, %v392, 0.0
    %v440 = vadd.f32 %v438, %v439
    %v441 = vsel %vm423, %v394, 0.0
    %v442 = vadd.f32 %v440, %v441
    %v443 = vsel %vm423, %v396, 0.0
    %v444 = vadd.f32 %v442, %v443
    %v445 = vsel %vm423, %v398, 0.0
    %v446 = vadd.f32 %v444, %v445
    %v447 = vsel %vm423, %v400, 0.0
    %v448 = vadd.f32 %v446, %v447
    %v449 = vsel %vm423, %v402, 0.0
    %v450 = vadd.f32 %v448, %v449
    %v451 = vsel %vm423, %v404, 0.0
    %v452 = vadd.f32 %v450, %v451
    %v453 = vsel %vm423, %v406, 0.0
    %v454 = vadd.f32 %v452, %v453
    %455 = vadd.xlane.f32.xlu0 %v454
    %v456 = vpop.xlane.xlu0 %455
    %v457 = vrot.slane %v456, 4
    %v458 = vadd.f32 %v456, %v457
    %v459 = vrot.slane %v458, 2
    %v460 = vadd.f32 %v458, %v459
    %v461 = vrot.slane %v460, 1
    %v462 = vadd.f32 %v460, %v461
    %s463 = vtos %v462
    %v464 = vstv %s342
    %465 = vst [vmem:[#allocation7] sm:$0xff] %v464
    %v466 = vstv %s463
    %467 = vst [vmem:[#allocation8] sm:$0xff] %v466
    // Predicated region
    $region18: #{tpu_custom_call.1} parent=1 // pred_check
      _
    $region19: #{tpu_custom_call.1} parent=1 // pred_check_branch
      %469 = sbr.rel (0) target = $region21
    $region20: #{tpu_custom_call.1} parent=1 // pred_region
      %s471 = ssub.s32 128, 128
      %472 = vsyncadd [#allocation4], %s471
      %s474 = sshll.u32 [#allocation7], 4
      %s475 = int_to_ptr.vmem [resolvable:$true] %s474
      %477 = dma.vmem_to_hbm [thread:$0]  %s475, 128, %s2, [#allocation4]
    $region21: #{tpu_custom_call.1} parent=1 // pred_fallthru
      _
    // Predicated region
    $region22: #{tpu_custom_call.1} parent=1 // pred_check
      _
    $region23: #{tpu_custom_call.1} parent=1 // pred_check_branch
      %479 = sbr.rel (0) target = $region25
    $region24: #{tpu_custom_call.1} parent=1 // pred_region
      %s481 = ssub.s32 128, 128
      %482 = vsyncadd [#allocation9], %s481
      %s484 = sshll.u32 [#allocation8], 4
      %s485 = int_to_ptr.vmem [resolvable:$true] %s484
      %487 = dma.vmem_to_hbm [thread:$0]  %s485, 128, %s3, [#allocation9]
    $region25: #{tpu_custom_call.1} parent=1 // pred_fallthru
      _
    // Predicated region
    $region26: #{tpu_custom_call.1} parent=1 // pred_check
      _
    $region27: #{tpu_custom_call.1} parent=1 // pred_check_branch
      %489 = sbr.rel (0) target = $region29
    $region28: #{tpu_custom_call.1} parent=1 // pred_region
      %490 = dma.done [#allocation4], 128
    $region29: #{tpu_custom_call.1} parent=1 // pred_fallthru
      _
    // Predicated region
    $region30: #{tpu_custom_call.1} parent=1 // pred_check
      _
    $region31: #{tpu_custom_call.1} parent=1 // pred_check_branch
      %492 = sbr.rel (0) target = $region33
    $region32: #{tpu_custom_call.1} parent=1 // pred_region
      %493 = dma.done [#allocation9], 128
    $region33: #{tpu_custom_call.1} parent=1 // pred_fallthru
      _
    %494 = vsyncpa [#allocation3], 1
    %495 = vsyncpa [#allocation6], 1
    %496 = vsyncpa [#allocation4], 1
    %497 = vsyncpa [#allocation9], 1

</llo_original>
